<compile_context>
chip_gen: v7x
topology: tpu7x:2x2x1
jax: 0.10.0
libtpu: 0.0.40
codegen_flags: <defaults>
</compile_context>

<pallas_src>
import jax
import jax.numpy as jnp
from jax.experimental import pallas as pl
from jax.experimental.pallas import tpu as pltpu


def _attention_kernel(x_ref, m_ref, wvt_ref, o_ref):
    """One batch tile.

    x_ref   : (TB, S, D)  input tile (bf16 or f32)
    m_ref   : (D, D)      fused score matrix  M = Wq^T @ Wk / sqrt(D)
    wvt_ref : (D, D)      pre-transposed value weight  Wv^T  (in, out)
    o_ref   : (TB, D)     output tile (f32)
    """
    TB, S, D = x_ref.shape

    x_in = x_ref[...]                              # (TB, S, D) compute dtype
    x2d = x_in.reshape(TB * S, D)                  # merged leading dims -> MXU
    x_f32 = x_in.astype(jnp.float32)               # VPU/EUP math stays f32

    # scores_t = x_t M x_t^T  ( == q_t · k_t / sqrt(D) ): MXU + lane reduce.
    xm = jnp.dot(x2d, m_ref[...], preferred_element_type=jnp.float32)
    scores = jnp.sum(xm.reshape(TB, S, D) * x_f32, axis=-1)        # (TB, S)

    # Numerically stable softmax over the sequence axis (f32 throughout).
    scores = scores - jnp.max(scores, axis=1, keepdims=True)
    e = jnp.exp(scores)
    denom = jnp.sum(e, axis=1, keepdims=True)
    atten = e * pl.reciprocal(denom, approx=True)                  # EUP vrcp

    # Deferred value projection: weight x by the softmax first (VPU multiply +
    # sublane reduce), then one small MXU matmul against Wv^T.  Exact rewrite
    # of sum_s atten[b,s] * (x[b,s,:] @ Wv^T).
    ctx = jnp.sum(atten[:, :, None] * x_f32, axis=1)               # (TB, D) f32
    out = jnp.dot(ctx.astype(wvt_ref.dtype), wvt_ref[...],
                  preferred_element_type=jnp.float32)              # (TB, D) f32
    o_ref[...] = out.astype(o_ref.dtype)


def _round_up(n, m):
    return ((n + m - 1) // m) * m


def _pick_block_b(B, S, D, in_bytes, vmem_budget=40 << 20):
    """Largest batch tile (multiple of 8) fitting the VMEM budget, >=4 grid steps."""
    d_lanes = _round_up(D, 128)                    # lane width resident in VMEM
    # Per batch row: double-buffered x DMA block + ~2 f32 in-kernel temps
    # (xm and the f32 copy of the x tile).
    per_row = S * d_lanes * (2 * in_bytes + 2 * 4)
    weights = 2 * 2 * d_lanes * d_lanes * in_bytes  # two (D,D) weights, <=2 bufs
    avail = max(vmem_budget - weights, 8 * per_row)
    cap = max(8, (avail // per_row) // 8 * 8)
    # Aim for >=4 grid steps when B allows (v7x 2-TC sharding + DMA overlap).
    target = max(8, _round_up(-(-B // 4), 8))
    return int(min(cap, target))


def _make_call(TB, S, D, Bp, out_dtype, cost, interpret, single_buffer_weights):
    def w_spec():
        if single_buffer_weights:
            # Constant block index across the grid -> one VMEM buffer suffices.
            return pl.BlockSpec((D, D), lambda i: (0, 0),
                                pipeline_mode=pl.Buffered(1))
        return pl.BlockSpec((D, D), lambda i: (0, 0))

    return pl.pallas_call(
        _attention_kernel,
        out_shape=jax.ShapeDtypeStruct((Bp, D), out_dtype),
        grid=(Bp // TB,),
        in_specs=[
            pl.BlockSpec((TB, S, D), lambda i: (i, 0, 0)),  # x: batch-tiled, pipelined
            w_spec(),                                       # M: VMEM-resident
            w_spec(),                                       # Wv^T: VMEM-resident
        ],
        out_specs=pl.BlockSpec((TB, D), lambda i: (i, 0)),
        compiler_params=pltpu.CompilerParams(
            dimension_semantics=("parallel",),
            # Above the 16/32 MiB default scoped limits, below v7x's 64 MiB
            # physical VMEM; the TB heuristic targets ~40 MiB of footprint.
            vmem_limit_bytes=48 * 1024 * 1024,
        ),
        cost_estimate=cost,
        interpret=interpret,
    )


def attention(x, wq, wk, wv, *, block_b=None, use_bf16=True, interpret=False):
    """x: (B, S, D); wq/wk/wv: (D, D) PyTorch-layout (out, in). Returns (B, D)."""
    B, S, D = x.shape
    out_dtype = x.dtype
    compute_dtype = jnp.bfloat16 if use_bf16 else x.dtype
    in_bytes = jnp.dtype(compute_dtype).itemsize

    # Fold Wq/Wk into a single score matrix (scale folded in) and pre-transpose
    # Wv, all in f32; cast only the MXU operands to the compute dtype.
    m = ((wq.T @ wk) * (1.0 / jnp.sqrt(jnp.float32(D)))).astype(compute_dtype)
    wvt = wv.T.astype(compute_dtype)
    x_in = x.astype(compute_dtype)

    # VMEM-aware batch tile; prefer a tile that divides B to avoid padding x.
    if block_b is None:
        block_b = _pick_block_b(B, S, D, in_bytes)
        if B % 8 == 0 and block_b % 8 == 0:
            for tb in range(block_b, 7, -8):
                if B % tb == 0:
                    block_b = tb
                    break
    TB = int(block_b)
    Bp = _round_up(B, TB)
    if Bp != B:
        # Batch pad is at most TB-1 rows; the feature dim is never padded.
        x_in = jnp.pad(x_in, ((0, Bp - B), (0, 0), (0, 0)))

    cost = pl.CostEstimate(
        flops=(2 * B * S * D * D        # score matmul  x @ (Wq^T Wk)
               + 2 * B * D * D          # deferred value matmul  ctx @ Wv^T
               + 4 * B * S * D),        # elementwise score / weighted-sum work
        transcendentals=B * S,          # exp
        bytes_accessed=B * S * D * in_bytes + 2 * D * D * in_bytes + B * D * 4,
    )

    try:
        out = _make_call(TB, S, D, Bp, out_dtype, cost, interpret,
                         single_buffer_weights=True)(x_in, m, wvt)
    except Exception:
        # pipeline_mode / pl.Buffered(1) unsupported on this jax version:
        # fall back to default (double-buffered) weight specs.
        out = _make_call(TB, S, D, Bp, out_dtype, cost, interpret,
                         single_buffer_weights=False)(x_in, m, wvt)

    return out[:B]


def attention_ref(x, wq, wk, wv):
    """Pure-JAX reference mirroring the PyTorch forward."""
    q = jnp.einsum("bsd,ed->bse", x, wq)
    k = jnp.einsum("bsd,ed->bse", x, wk)
    v = jnp.einsum("bsd,ed->bse", x, wv)
    atten = jnp.sum(q * k, axis=-1) / jnp.sqrt(jnp.float32(x.shape[-1]))
    atten = jax.nn.softmax(atten, axis=1)
    return jnp.sum(atten[..., None] * v, axis=1)


if __name__ == "__main__":
    B, S, D = 2, 8, 32
    key = jax.random.PRNGKey(0)
    kx, kq, kk, kv = jax.random.split(key, 4)

    x = jax.random.normal(kx, (B, S, D), dtype=jnp.float32)
    # PyTorch nn.Linear default init: U(-1/sqrt(in), 1/sqrt(in)); weight (out, in).
    bound = 1.0 / jnp.sqrt(jnp.float32(D))
    wq = jax.random.uniform(kq, (D, D), jnp.float32, -bound, bound)
    wk = jax.random.uniform(kk, (D, D), jnp.float32, -bound, bound)
    wv = jax.random.uniform(kv, (D, D), jnp.float32, -bound, bound)

    out = jax.block_until_ready(attention(x, wq, wk, wv))
    ref = attention_ref(x, wq, wk, wv)

    assert out.shape == (B, D)
    # Tolerance sized for bf16 MXU operands + Wq^T·Wk fusion + approx reciprocal.
    assert jnp.allclose(out, ref, atol=2e-2, rtol=2e-2), "mismatch vs reference"

    print("KERNEL_OK")
</pallas_src>

<mosaic_0001>
module attributes {stable_mosaic.version = 11 : i64} {
  func.func @_attention_kernel(%arg0: i32, %arg1: memref<8x8x32xbf16, #tpu.memory_space<vmem>>, %arg2: memref<32x32xbf16, #tpu.memory_space<vmem>>, %arg3: memref<32x32xbf16, #tpu.memory_space<vmem>>, %arg4: memref<8x32xf32, #tpu.memory_space<vmem>>) attributes {dimension_semantics = [#tpu.dimension_semantics<parallel>], iteration_bounds = array<i64: 1>, scalar_prefetch = 0 : i64, scratch_operands = 0 : i64, tpu.core_type = #tpu.core_type<tc>, window_params = [{transform_indices = @transform_0, window_bounds = array<i64: 8, 8, 32>}, {pipeline_mode = #tpu.pipeline_mode<synchronous>, transform_indices = @transform_1, window_bounds = array<i64: 32, 32>}, {pipeline_mode = #tpu.pipeline_mode<synchronous>, transform_indices = @transform_2, window_bounds = array<i64: 32, 32>}, {transform_indices = @transform_3, window_bounds = array<i64: 8, 32>}]} {
    %c0 = arith.constant 0 : index
    %c0_0 = arith.constant 0 : index
    %c0_1 = arith.constant 0 : index
    %0 = vector.load %arg1[%c0, %c0_0, %c0_1] : memref<8x8x32xbf16, #tpu.memory_space<vmem>>, vector<8x8x32xbf16>
    %1 = vector.shape_cast %0 : vector<8x8x32xbf16> to vector<64x32xbf16>
    %2 = arith.extf %0 : vector<8x8x32xbf16> to vector<8x8x32xf32>
    %c0_2 = arith.constant 0 : index
    %c0_3 = arith.constant 0 : index
    %3 = vector.load %arg2[%c0_2, %c0_3] : memref<32x32xbf16, #tpu.memory_space<vmem>>, vector<32x32xbf16>
    %cst = arith.constant dense<0.000000e+00> : vector<64x32xf32>
    %4 = tpu.matmul %1, %3, %cst {dimension_numbers = #tpu.dot_dimension_numbers<[1], [0], [0], [1], [0, 0, 1, 1], [], []>} : vector<64x32xbf16>, vector<32x32xbf16>, vector<64x32xf32> -> vector<64x32xf32>
    %5 = vector.shape_cast %4 : vector<64x32xf32> to vector<8x8x32xf32>
    %6 = arith.mulf %5, %2 : vector<8x8x32xf32>
    %cst_4 = arith.constant dense<0.000000e+00> : vector<8x8xf32>
    %7 = vector.multi_reduction <add>, %6, %cst_4 [2] : vector<8x8x32xf32> to vector<8x8xf32>
    %cst_5 = arith.constant dense<0xFF800000> : vector<8xf32>
    %8 = vector.multi_reduction <maximumf>, %7, %cst_5 [1] : vector<8x8xf32> to vector<8xf32>
    %9 = vector.shape_cast %8 : vector<8xf32> to vector<8x1xf32>
    %10 = vector.broadcast %9 : vector<8x1xf32> to vector<8x8xf32>
    %11 = arith.subf %7, %10 : vector<8x8xf32>
    %12 = math.exp %11 : vector<8x8xf32>
    %cst_6 = arith.constant dense<0.000000e+00> : vector<8xf32>
    %13 = vector.multi_reduction <add>, %12, %cst_6 [1] : vector<8x8xf32> to vector<8xf32>
    %14 = vector.shape_cast %13 : vector<8xf32> to vector<8x1xf32>
    %15 = tpu.reciprocal %14 {approx = true} : vector<8x1xf32> -> vector<8x1xf32>
    %16 = vector.broadcast %15 : vector<8x1xf32> to vector<8x8xf32>
    %17 = arith.mulf %12, %16 : vector<8x8xf32>
    %18 = vector.shape_cast %17 : vector<8x8xf32> to vector<8x8x1xf32>
    %19 = vector.broadcast %18 : vector<8x8x1xf32> to vector<8x8x32xf32>
    %20 = arith.mulf %19, %2 : vector<8x8x32xf32>
    %cst_7 = arith.constant dense<0.000000e+00> : vector<8x32xf32>
    %21 = vector.multi_reduction <add>, %20, %cst_7 [1] : vector<8x8x32xf32> to vector<8x32xf32>
    %22 = arith.truncf %21 : vector<8x32xf32> to vector<8x32xbf16>
    %c0_8 = arith.constant 0 : index
    %c0_9 = arith.constant 0 : index
    %23 = vector.load %arg3[%c0_8, %c0_9] : memref<32x32xbf16, #tpu.memory_space<vmem>>, vector<32x32xbf16>
    %cst_10 = arith.constant dense<0.000000e+00> : vector<8x32xf32>
    %24 = tpu.matmul %22, %23, %cst_10 {dimension_numbers = #tpu.dot_dimension_numbers<[1], [0], [0], [1], [0, 0, 1, 1], [], []>} : vector<8x32xbf16>, vector<32x32xbf16>, vector<8x32xf32> -> vector<8x32xf32>
    %c0_11 = arith.constant 0 : index
    %c0_12 = arith.constant 0 : index
    %25 = vector.load %arg4[%c0_11, %c0_12] : memref<8x32xf32, #tpu.memory_space<vmem>>, vector<8x32xf32>
    tpu.vector_store %arg4[%c0_11, %c0_12], %24 {strides = array<i32>} : memref<8x32xf32, #tpu.memory_space<vmem>>, vector<8x32xf32>,
    return
  }
  func.func @transform_0(%arg0: i32) -> (i32, i32, i32) {
    %c0_i32 = arith.constant 0 : i32
    %c0_i32_0 = arith.constant 0 : i32
    %c0_i32_1 = arith.constant 0 : i32
    return %arg0, %c0_i32, %c0_i32_0 : i32, i32, i32
  }
  func.func @transform_1(%arg0: i32) -> (i32, i32) {
    %c0_i32 = arith.constant 0 : i32
    %c0_i32_0 = arith.constant 0 : i32
    %c0_i32_1 = arith.constant 0 : i32
    return %c0_i32, %c0_i32_0 : i32, i32
  }
  func.func @transform_2(%arg0: i32) -> (i32, i32) {
    %c0_i32 = arith.constant 0 : i32
    %c0_i32_0 = arith.constant 0 : i32
    %c0_i32_1 = arith.constant 0 : i32
    return %c0_i32, %c0_i32_0 : i32, i32
  }
  func.func @transform_3(%arg0: i32) -> (i32, i32) {
    %c0_i32 = arith.constant 0 : i32
    %c0_i32_0 = arith.constant 0 : i32
    return %arg0, %c0_i32 : i32, i32
  }
}

module attributes {stable_mosaic.version = 11 : i64} {
  func.func @_attention_kernel(%arg0: i32, %arg1: memref<8x8x32xbf16, #tpu.memory_space<vmem>>, %arg2: memref<32x32xbf16, #tpu.memory_space<vmem>>, %arg3: memref<32x32xbf16, #tpu.memory_space<vmem>>, %arg4: memref<8x32xf32, #tpu.memory_space<vmem>>) attributes {dimension_semantics = [#tpu.dimension_semantics<parallel>], iteration_bounds = array<i64: 1>, scalar_prefetch = 0 : i64, scratch_operands = 0 : i64, tpu.core_type = #tpu.core_type<tc>, window_params = [{transform_indices = @transform_0, window_bounds = array<i64: 8, 8, 32>}, {pipeline_mode = #tpu.pipeline_mode<synchronous>, transform_indices = @transform_1, window_bounds = array<i64: 32, 32>}, {pipeline_mode = #tpu.pipeline_mode<synchronous>, transform_indices = @transform_2, window_bounds = array<i64: 32, 32>}, {transform_indices = @transform_3, window_bounds = array<i64: 8, 32>}]} {
    %c0 = arith.constant 0 : index
    %c0_0 = arith.constant 0 : index
    %c0_1 = arith.constant 0 : index
    %0 = vector.load %arg1[%c0, %c0_0, %c0_1] : memref<8x8x32xbf16, #tpu.memory_space<vmem>>, vector<8x8x32xbf16>
    %1 = vector.shape_cast %0 : vector<8x8x32xbf16> to vector<64x32xbf16>
    %2 = arith.extf %0 : vector<8x8x32xbf16> to vector<8x8x32xf32>
    %c0_2 = arith.constant 0 : index
    %c0_3 = arith.constant 0 : index
    %3 = vector.load %arg2[%c0_2, %c0_3] : memref<32x32xbf16, #tpu.memory_space<vmem>>, vector<32x32xbf16>
    %cst = arith.constant dense<0.000000e+00> : vector<64x32xf32>
    %4 = tpu.matmul %1, %3, %cst {dimension_numbers = #tpu.dot_dimension_numbers<[1], [0], [0], [1], [0, 0, 1, 1], [], []>} : vector<64x32xbf16>, vector<32x32xbf16>, vector<64x32xf32> -> vector<64x32xf32>
    %5 = vector.shape_cast %4 : vector<64x32xf32> to vector<8x8x32xf32>
    %6 = arith.mulf %5, %2 : vector<8x8x32xf32>
    %cst_4 = arith.constant dense<0.000000e+00> : vector<8x8xf32>
    %7 = vector.multi_reduction <add>, %6, %cst_4 [2] : vector<8x8x32xf32> to vector<8x8xf32>
    %cst_5 = arith.constant dense<0xFF800000> : vector<8xf32>
    %8 = vector.multi_reduction <maximumf>, %7, %cst_5 [1] : vector<8x8xf32> to vector<8xf32>
    %9 = vector.shape_cast %8 : vector<8xf32> to vector<8x1xf32>
    %10 = vector.broadcast %9 : vector<8x1xf32> to vector<8x8xf32>
    %11 = arith.subf %7, %10 : vector<8x8xf32>
    %12 = math.exp %11 : vector<8x8xf32>
    %cst_6 = arith.constant dense<0.000000e+00> : vector<8xf32>
    %13 = vector.multi_reduction <add>, %12, %cst_6 [1] : vector<8x8xf32> to vector<8xf32>
    %14 = vector.shape_cast %13 : vector<8xf32> to vector<8x1xf32>
    %15 = tpu.reciprocal %14 {approx = true} : vector<8x1xf32> -> vector<8x1xf32>
    %16 = vector.broadcast %15 : vector<8x1xf32> to vector<8x8xf32>
    %17 = arith.mulf %12, %16 : vector<8x8xf32>
    %18 = vector.shape_cast %17 : vector<8x8xf32> to vector<8x8x1xf32>
    %19 = vector.broadcast %18 : vector<8x8x1xf32> to vector<8x8x32xf32>
    %20 = arith.mulf %19, %2 : vector<8x8x32xf32>
    %cst_7 = arith.constant dense<0.000000e+00> : vector<8x32xf32>
    %21 = vector.multi_reduction <add>, %20, %cst_7 [1] : vector<8x8x32xf32> to vector<8x32xf32>
    %22 = arith.truncf %21 : vector<8x32xf32> to vector<8x32xbf16>
    %c0_8 = arith.constant 0 : index
    %c0_9 = arith.constant 0 : index
    %23 = vector.load %arg3[%c0_8, %c0_9] : memref<32x32xbf16, #tpu.memory_space<vmem>>, vector<32x32xbf16>
    %cst_10 = arith.constant dense<0.000000e+00> : vector<8x32xf32>
    %24 = tpu.matmul %22, %23, %cst_10 {dimension_numbers = #tpu.dot_dimension_numbers<[1], [0], [0], [1], [0, 0, 1, 1], [], []>} : vector<8x32xbf16>, vector<32x32xbf16>, vector<8x32xf32> -> vector<8x32xf32>
    %c0_11 = arith.constant 0 : index
    %c0_12 = arith.constant 0 : index
    %25 = vector.load %arg4[%c0_11, %c0_12] : memref<8x32xf32, #tpu.memory_space<vmem>>, vector<8x32xf32>
    tpu.vector_store %arg4[%c0_11, %c0_12], %24 {strides = array<i32>} : memref<8x32xf32, #tpu.memory_space<vmem>>, vector<8x32xf32>,
    return
  }
  func.func @transform_0(%arg0: i32) -> (i32, i32, i32) {
    %c0_i32 = arith.constant 0 : i32
    %c0_i32_0 = arith.constant 0 : i32
    %c0_i32_1 = arith.constant 0 : i32
    return %arg0, %c0_i32, %c0_i32_0 : i32, i32, i32
  }
  func.func @transform_1(%arg0: i32) -> (i32, i32) {
    %c0_i32 = arith.constant 0 : i32
    %c0_i32_0 = arith.constant 0 : i32
    %c0_i32_1 = arith.constant 0 : i32
    return %c0_i32, %c0_i32_0 : i32, i32
  }
  func.func @transform_2(%arg0: i32) -> (i32, i32) {
    %c0_i32 = arith.constant 0 : i32
    %c0_i32_0 = arith.constant 0 : i32
    %c0_i32_1 = arith.constant 0 : i32
    return %c0_i32, %c0_i32_0 : i32, i32
  }
  func.func @transform_3(%arg0: i32) -> (i32, i32) {
    %c0_i32 = arith.constant 0 : i32
    %c0_i32_0 = arith.constant 0 : i32
    return %arg0, %c0_i32 : i32, i32
  }
}

</mosaic_0001>

<llo_original>
// kernel: tpu_custom_call.1
$region0: #{tpu_custom_call.1}
  #allocation0 [shape = 'u32[]', space=smem, size = 0x4, offset = 0x4, fixed_abs, tag = 'smem constant byte address 0x4 - core index']
  #allocation1 [shape = 'u32[144,128]{1,0:T(1,128)}', space=vmem, size = 0x12000, scoped, tag = 'internal scratch']
  %s0 = inlined_call_operand.hbm [shape: bf16[8,8,32], index: 0, kind: input, shape index: {}]
  %s1 = inlined_call_operand.hbm [shape: bf16[32,32], index: 1, kind: input, shape index: {}]
  %s2 = inlined_call_operand.hbm [shape: bf16[32,32], index: 2, kind: input, shape index: {}]
  %s3 = inlined_call_operand.hbm [shape: f32[8,32], index: 3, kind: output, shape index: {}]
  %s4 = sld [smem:[#allocation0]]
  $region34: #{tpu_custom_call.1} parent=0
    _
  %s6 = ssub.s32 1, %s4
  %s7 = scalar_select 0, %s6, %s4
  $region1: #{tpu_custom_call.1} parent=0
    #allocation2 [shape = 'u8[16384]{0}', space=vmem, size = 0x4000, scoped, tag = 'input window, operand 0, single buffered']
    #allocation3 [shape = 's32[1]{0}', space=sflag, size = 0x4, scoped, tag = 'scoped memory for tpu_custom_call.1']
    #allocation4 [shape = 's32[1]{0}', space=sflag, size = 0x4, scoped, tag = 'scoped memory for tpu_custom_call.1']
    #allocation5 [shape = 'u8[8192]{0}', space=vmem, size = 0x2000, scoped, tag = 'input window, operand 1, single buffered']
    #allocation6 [shape = 's32[1]{0}', space=sflag, size = 0x4, scoped, tag = 'scoped memory for tpu_custom_call.1']
    #allocation7 [shape = 'u8[8192]{0}', space=vmem, size = 0x2000, scoped, tag = 'input window, operand 2, single buffered']
    #allocation8 [shape = 'u8[4096]{0}', space=vmem, size = 0x1000, scoped, tag = 'output window, operand 0, single buffered']
    %8 = vsyncpa [#allocation3], 0
    %9 = vsyncpa [#allocation6], 0
    %10 = vsyncpa [#allocation4], 0
    // Predicated region
    $region2: #{tpu_custom_call.1} parent=1 // pred_check
      _
    $region3: #{tpu_custom_call.1} parent=1 // pred_check_branch
      %12 = sbr.rel (0) target = $region5
    $region4: #{tpu_custom_call.1} parent=1 // pred_region
      %s14 = ssub.s32 512, 512
      %15 = vsyncadd [#allocation3], %s14
      %s16 = sshll.u32 [#allocation2], 4
      %s17 = int_to_ptr.vmem [resolvable:$true] %s16
      %22 = dma.hbm_to_vmem [thread:$0]  %s0, 512, %s17, [#allocation3], 64, 64, 4
    $region5: #{tpu_custom_call.1} parent=1 // pred_fallthru
      _
    // Predicated region
    $region6: #{tpu_custom_call.1} parent=1 // pred_check
      _
    $region7: #{tpu_custom_call.1} parent=1 // pred_check_branch
      %24 = sbr.rel (0) target = $region9
    $region8: #{tpu_custom_call.1} parent=1 // pred_region
      %s26 = ssub.s32 256, 256
      %27 = vsyncadd [#allocation6], %s26
      %s28 = sshll.u32 [#allocation5], 4
      %s29 = int_to_ptr.vmem [resolvable:$true] %s28
      %34 = dma.hbm_to_vmem [thread:$0]  %s1, 256, %s29, [#allocation6], 64, 64, 4
    $region9: #{tpu_custom_call.1} parent=1 // pred_fallthru
      _
    // Predicated region
    $region10: #{tpu_custom_call.1} parent=1 // pred_check
      _
    $region11: #{tpu_custom_call.1} parent=1 // pred_check_branch
      %36 = sbr.rel (0) target = $region13
    $region12: #{tpu_custom_call.1} parent=1 // pred_region
      %s38 = ssub.s32 256, 256
      %39 = vsyncadd [#allocation6], %s38
      %s40 = sshll.u32 [#allocation7], 4
      %s41 = int_to_ptr.vmem [resolvable:$true] %s40
      %46 = dma.hbm_to_vmem [thread:$0]  %s2, 256, %s41, [#allocation6], 64, 64, 4
    $region13: #{tpu_custom_call.1} parent=1 // pred_fallthru
      _
    // Predicated region
    $region14: #{tpu_custom_call.1} parent=1 // pred_check
      _
    $region15: #{tpu_custom_call.1} parent=1 // pred_check_branch
      %48 = sbr.rel (0) target = $region17
    $region16: #{tpu_custom_call.1} parent=1 // pred_region
      %49 = dma.done [#allocation3], 512
    $region17: #{tpu_custom_call.1} parent=1 // pred_fallthru
      _
    // Predicated region
    $region18: #{tpu_custom_call.1} parent=1 // pred_check
      _
    $region19: #{tpu_custom_call.1} parent=1 // pred_check_branch
      %51 = sbr.rel (0) target = $region21
    $region20: #{tpu_custom_call.1} parent=1 // pred_region
      %52 = dma.done [#allocation6], 256
    $region21: #{tpu_custom_call.1} parent=1 // pred_fallthru
      _
    // Predicated region
    $region22: #{tpu_custom_call.1} parent=1 // pred_check
      _
    $region23: #{tpu_custom_call.1} parent=1 // pred_check_branch
      %54 = sbr.rel (0) target = $region25
    $region24: #{tpu_custom_call.1} parent=1 // pred_region
      %55 = dma.done [#allocation6], 256
    $region25: #{tpu_custom_call.1} parent=1 // pred_fallthru
      _
    %v57 = vld [vmem:[#allocation2] sm:$0xf]
    %v58 = vld [vmem:[#allocation2 + $0x4] sm:$0xf]
    %v59 = vld [vmem:[#allocation2 + $0x8] sm:$0xf]
    %v60 = vld [vmem:[#allocation2 + $0xc] sm:$0xf]
    %v61 = vld [vmem:[#allocation2 + $0x10] sm:$0xf]
    %v62 = vld [vmem:[#allocation2 + $0x14] sm:$0xf]
    %v63 = vld [vmem:[#allocation2 + $0x18] sm:$0xf]
    %v64 = vld [vmem:[#allocation2 + $0x1c] sm:$0xf]
    %v65 = vunpack.c.l.bf16 %v57
    %v66 = vunpack.c.l.bf16 %v58
    %v67 = vunpack.c.l.bf16 %v59
    %v68 = vunpack.c.l.bf16 %v60
    %v69 = vunpack.c.l.bf16 %v61
    %v70 = vunpack.c.l.bf16 %v62
    %v71 = vunpack.c.l.bf16 %v63
    %v72 = vunpack.c.l.bf16 %v64
    %v73 = vld [vmem:[#allocation5] sm:$0xf]
    %v74 = vld [vmem:[#allocation5 + $0x4] sm:$0xf]
    %v75 = vld [vmem:[#allocation5 + $0x8] sm:$0xf]
    %v76 = vld [vmem:[#allocation5 + $0xc] sm:$0xf]
    %v85 = vunpack.c.l.b16 %v57
    %v86 = vunpack.c.l.b16 %v58
    %v87 = vunpack.c.l.b16 %v59
    %v88 = vunpack.c.l.b16 %v60
    %v89 = vunpack.c.l.b16 %v61
    %v90 = vunpack.c.l.b16 %v62
    %v91 = vunpack.c.l.b16 %v63
    %v92 = vunpack.c.l.b16 %v64
    %v93 = vpack.c.b16 %v86, %v85
    %v94 = vpack.c.b16 %v88, %v87
    %v95 = vpack.c.b16 %v90, %v89
    %v96 = vpack.c.b16 %v92, %v91
    %v101 = vunpack.c.l.b16 %v73
    %v102 = vunpack.c.l.b16 %v74
    %v103 = vunpack.c.l.b16 %v75
    %v104 = vunpack.c.l.b16 %v76
    %v105 = vpack.c.b16 %v102, %v101
    %v106 = vpack.c.b16 %v104, %v103
    %vm109 = vcmask 261120
    %v111 = vsel %vm109, %v93, 0
    %v114 = vsel %vm109, %v94, 0
    %v117 = vsel %vm109, %v95, 0
    %v120 = vsel %vm109, %v96, 0
    %122 = vmatprep.subr.bf16.mxu0 0
    %123 = vmatpush1.bf16.msra.mxu0 %v105
    %124 = vmatprep.subr.bf16.mxu0 0
    %125 = vmatpush1.bf16.msra.mxu0 %v106
    %126 = vmatprep.subr.bf16.mxu0 0
    %127 = vmatpush1.bf16.msra.mxu0 0
    %128 = vmatprep.subr.bf16.mxu0 0
    %129 = vmatpush1.bf16.msra.mxu0 0
    %130 = vmatprep.subr.bf16.mxu0 0
    %131 = vmatpush1.bf16.msra.mxu0 0
    %132 = vmatprep.subr.bf16.mxu0 0
    %133 = vmatpush1.bf16.msra.mxu0 0
    %134 = vmatprep.subr.bf16.mxu0 0
    %135 = vmatpush1.bf16.msra.mxu0 0
    %136 = vmatprep.subr.bf16.mxu0 0
    %137 = vmatpush1.bf16.msra.mxu0 0
    %138 = vmatprep.subr.bf16.mxu0 0
    %139 = vmatpush1.bf16.msra.mxu0 0
    %140 = vmatprep.subr.bf16.mxu0 0
    %141 = vmatpush1.bf16.msra.mxu0 0
    %142 = vmatprep.subr.bf16.mxu0 0
    %143 = vmatpush1.bf16.msra.mxu0 0
    %144 = vmatprep.subr.bf16.mxu0 0
    %145 = vmatpush1.bf16.msra.mxu0 0
    %146 = vmatprep.subr.bf16.mxu0 0
    %147 = vmatpush1.bf16.msra.mxu0 0
    %148 = vmatprep.subr.bf16.mxu0 0
    %149 = vmatpush1.bf16.msra.mxu0 0
    %150 = vmatprep.subr.bf16.mxu0 0
    %151 = vmatpush1.bf16.msra.mxu0 0
    %152 = vmatprep.subr.bf16.mxu0 0
    %153 = vmatpush1.bf16.msra.mxu0 0
    %154 = vmatprep.mubr.bf16.mxu0 0
    %155 = vmatmul.mubr.bf16.gmra.mrb[0].mxu0 %v111
    %v156 = vpop.f32.mrb[0].mxu0
    %v157 = vadd.f32 0.0, %v156
    %v158 = vpop.f32.mrb[0].mxu0
    %v159 = vpop.f32.mrb[0].mxu0
    %v160 = vadd.f32 0.0, %v159
    %v161 = vpop.f32.mrb[0].mxu0
    %162 = vmatprep.mubr.bf16.mxu0 0
    %163 = vmatmul.mubr.bf16.gmra.mrb[0].mxu0 %v114
    %v164 = vpop.f32.mrb[0].mxu0
    %v165 = vadd.f32 0.0, %v164
    %v166 = vpop.f32.mrb[0].mxu0
    %v167 = vpop.f32.mrb[0].mxu0
    %v168 = vadd.f32 0.0, %v167
    %v169 = vpop.f32.mrb[0].mxu0
    %170 = vmatprep.mubr.bf16.mxu0 0
    %171 = vmatmul.mubr.bf16.gmra.mrb[0].mxu0 %v117
    %v172 = vpop.f32.mrb[0].mxu0
    %v173 = vadd.f32 0.0, %v172
    %v174 = vpop.f32.mrb[0].mxu0
    %v175 = vpop.f32.mrb[0].mxu0
    %v176 = vadd.f32 0.0, %v175
    %v177 = vpop.f32.mrb[0].mxu0
    %178 = vmatprep.mubr.bf16.mxu0 0
    %179 = vmatmul.mubr.bf16.gmra.mrb[0].mxu0 %v120
    %v180 = vpop.f32.mrb[0].mxu0
    %v181 = vadd.f32 0.0, %v180
    %v182 = vpop.f32.mrb[0].mxu0
    %v183 = vpop.f32.mrb[0].mxu0
    %v184 = vadd.f32 0.0, %v183
    %v185 = vpop.f32.mrb[0].mxu0
    %186 = vdwg.mxu0
    %v187 = vmul.f32 %v157, %v65
    %v188 = vmul.f32 %v160, %v66
    %v189 = vmul.f32 %v165, %v67
    %v190 = vmul.f32 %v168, %v68
    %v191 = vmul.f32 %v173, %v69
    %v192 = vmul.f32 %v176, %v70
    %v193 = vmul.f32 %v181, %v71
    %v194 = vmul.f32 %v184, %v72
    %v195 = vsel %vm109, %v187, 0.0
    %196 = vadd.xlane.f32.xlu0 %v195
    %v197 = vpop.xlane.xlu0 %196
    %v198 = vsel %vm109, %v188, 0.0
    %199 = vadd.xlane.f32.xlu0 %v198
    %v200 = vpop.xlane.xlu0 %199
    %v201 = vsel %vm109, %v189, 0.0
    %202 = vadd.xlane.f32.xlu0 %v201
    %v203 = vpop.xlane.xlu0 %202
    %v204 = vsel %vm109, %v190, 0.0
    %205 = vadd.xlane.f32.xlu0 %v204
    %v206 = vpop.xlane.xlu0 %205
    %v207 = vsel %vm109, %v191, 0.0
    %208 = vadd.xlane.f32.xlu0 %v207
    %v209 = vpop.xlane.xlu0 %208
    %v210 = vsel %vm109, %v192, 0.0
    %211 = vadd.xlane.f32.xlu0 %v210
    %v212 = vpop.xlane.xlu0 %211
    %v213 = vsel %vm109, %v193, 0.0
    %214 = vadd.xlane.f32.xlu0 %v213
    %v215 = vpop.xlane.xlu0 %214
    %v216 = vsel %vm109, %v194, 0.0
    %217 = vadd.xlane.f32.xlu0 %v216
    %v218 = vpop.xlane.xlu0 %217
    %v227 = vlaneseq
    %v228 = vand.u32 %v227, 127
    %v229 = vlaneseq
    %v230 = vshrl.u32 %v229, 7
    %v231 = vsub.s32 %v228, %v230
    %v232 = vrot.slane %v197, %v231
    %v233 = vlaneseq
    %v234 = vshrl.u32 %v233, 7
    %v235 = vsub.s32 %v228, %v234
    %v236 = vrot.slane %v200, %v235
    %v237 = vlaneseq
    %v238 = vshrl.u32 %v237, 7
    %v239 = vsub.s32 %v228, %v238
    %v240 = vrot.slane %v203, %v239
    %v241 = vlaneseq
    %v242 = vshrl.u32 %v241, 7
    %v243 = vsub.s32 %v228, %v242
    %v244 = vrot.slane %v206, %v243
    %v245 = vlaneseq
    %v246 = vshrl.u32 %v245, 7
    %v247 = vsub.s32 %v228, %v246
    %v248 = vrot.slane %v209, %v247
    %v249 = vlaneseq
    %v250 = vshrl.u32 %v249, 7
    %v251 = vsub.s32 %v228, %v250
    %v252 = vrot.slane %v212, %v251
    %v253 = vlaneseq
    %v254 = vshrl.u32 %v253, 7
    %v255 = vsub.s32 %v228, %v254
    %v256 = vrot.slane %v215, %v255
    %v257 = vlaneseq
    %v258 = vshrl.u32 %v257, 7
    %v259 = vsub.s32 %v228, %v258
    %v260 = vrot.slane %v218, %v259
    %vm261 = vcmask 1041409
    %v262 = vsel %vm261, %v236, %v232
    %vm263 = vcmask 1042434
    %v264 = vsel %vm263, %v240, %v262
    %vm265 = vcmask 1043459
    %v266 = vsel %vm265, %v244, %v264
    %vm267 = vcmask 1044484
    %v268 = vsel %vm267, %v248, %v266
    %vm269 = vcmask 1045509
    %v270 = vsel %vm269, %v252, %v268
    %vm271 = vcmask 1046534
    %v272 = vsel %vm271, %v256, %v270
    %vm273 = vcmask 1047559
    %v274 = vsel %vm273, %v260, %v272
    %vm276 = vcmask 64512
    %v277 = vsel %vm276, %v274, -inf
    %278 = vmax.xlane.f32.xlu0 %v277
    %v279 = vpop.xlane.xlu0 %278
    %v281 = vlaneseq
    %v282 = vshrl.u32 %v281, 7
    %v283 = vsub.s32 0, %v282
    %v284 = vrot.slane %v279, %v283
    %v285 = vlaneseq
    %v286 = vshrl.u32 %v285, 7
    %v287 = vsub.s32 1, %v286
    %v288 = vrot.slane %v279, %v287
    %v289 = vlaneseq
    %v290 = vshrl.u32 %v289, 7
    %v291 = vsub.s32 2, %v290
    %v292 = vrot.slane %v279, %v291
    %v293 = vlaneseq
    %v294 = vshrl.u32 %v293, 7
    %v295 = vsub.s32 3, %v294
    %v296 = vrot.slane %v279, %v295
    %v297 = vlaneseq
    %v298 = vshrl.u32 %v297, 7
    %v299 = vsub.s32 4, %v298
    %v300 = vrot.slane %v279, %v299
    %v301 = vlaneseq
    %v302 = vshrl.u32 %v301, 7
    %v303 = vsub.s32 5, %v302
    %v304 = vrot.slane %v279, %v303
    %v305 = vlaneseq
    %v306 = vshrl.u32 %v305, 7
    %v307 = vsub.s32 6, %v306
    %v308 = vrot.slane %v279, %v307
    %v309 = vlaneseq
    %v310 = vshrl.u32 %v309, 7
    %v311 = vsub.s32 7, %v310
    %v312 = vrot.slane %v279, %v311
    %v321 = vsub.f32 %v197, %v284
    %v322 = vsub.f32 %v200, %v288
    %v323 = vsub.f32 %v203, %v292
    %v324 = vsub.f32 %v206, %v296
    %v325 = vsub.f32 %v209, %v300
    %v326 = vsub.f32 %v212, %v304
    %v327 = vsub.f32 %v215, %v308
    %v328 = vsub.f32 %v218, %v312
    %v329 = vmul.f32 %v321, 1.442695
    %v330 = vpow.pop %v329
    %v331 = vmul.f32 %v322, 1.442695
    %v332 = vpow.pop %v331
    %v333 = vmul.f32 %v323, 1.442695
    %v334 = vpow.pop %v333
    %v335 = vmul.f32 %v324, 1.442695
    %v336 = vpow.pop %v335
    %v337 = vmul.f32 %v325, 1.442695
    %v338 = vpow.pop %v337
    %v339 = vmul.f32 %v326, 1.442695
    %v340 = vpow.pop %v339
    %v341 = vmul.f32 %v327, 1.442695
    %v342 = vpow.pop %v341
    %v343 = vmul.f32 %v328, 1.442695
    %v344 = vpow.pop %v343
    %353 = vset.pattern.permute.xlu0 0
    %354 = vperm.xlu0 %353, %v330
    %v355 = vpop.permute.xlu0 %354
    %356 = vset.pattern.permute.xlu0 0
    %357 = vperm.xlu0 %356, %v332
    %v358 = vpop.permute.xlu0 %357
    %359 = vset.pattern.permute.xlu0 0
    %360 = vperm.xlu0 %359, %v334
    %v361 = vpop.permute.xlu0 %360
    %362 = vset.pattern.permute.xlu0 0
    %363 = vperm.xlu0 %362, %v336
    %v364 = vpop.permute.xlu0 %363
    %365 = vset.pattern.permute.xlu0 0
    %366 = vperm.xlu0 %365, %v338
    %v367 = vpop.permute.xlu0 %366
    %368 = vset.pattern.permute.xlu0 0
    %369 = vperm.xlu0 %368, %v340
    %v370 = vpop.permute.xlu0 %369
    %371 = vset.pattern.permute.xlu0 0
    %372 = vperm.xlu0 %371, %v342
    %v373 = vpop.permute.xlu0 %372
    %374 = vset.pattern.permute.xlu0 0
    %375 = vperm.xlu0 %374, %v344
    %v376 = vpop.permute.xlu0 %375
    %v377 = vlaneseq
    %v378 = vshrl.u32 %v377, 7
    %v379 = vsub.s32 %v228, %v378
    %v380 = vrot.slane %v355, %v379
    %v381 = vlaneseq
    %v382 = vshrl.u32 %v381, 7
    %v383 = vsub.s32 %v228, %v382
    %v384 = vrot.slane %v358, %v383
    %v385 = vlaneseq
    %v386 = vshrl.u32 %v385, 7
    %v387 = vsub.s32 %v228, %v386
    %v388 = vrot.slane %v361, %v387
    %v389 = vlaneseq
    %v390 = vshrl.u32 %v389, 7
    %v391 = vsub.s32 %v228, %v390
    %v392 = vrot.slane %v364, %v391
    %v393 = vlaneseq
    %v394 = vshrl.u32 %v393, 7
    %v395 = vsub.s32 %v228, %v394
    %v396 = vrot.slane %v367, %v395
    %v397 = vlaneseq
    %v398 = vshrl.u32 %v397, 7
    %v399 = vsub.s32 %v228, %v398
    %v400 = vrot.slane %v370, %v399
    %v401 = vlaneseq
    %v402 = vshrl.u32 %v401, 7
    %v403 = vsub.s32 %v228, %v402
    %v404 = vrot.slane %v373, %v403
    %v405 = vlaneseq
    %v406 = vshrl.u32 %v405, 7
    %v407 = vsub.s32 %v228, %v406
    %v408 = vrot.slane %v376, %v407
    %v409 = vsel %vm261, %v384, %v380
    %v410 = vsel %vm263, %v388, %v409
    %v411 = vsel %vm265, %v392, %v410
    %v412 = vsel %vm267, %v396, %v411
    %v413 = vsel %vm269, %v400, %v412
    %v414 = vsel %vm271, %v404, %v413
    %v415 = vsel %vm273, %v408, %v414
    %v417 = vsel %vm276, %v415, 0.0
    %418 = vadd.xlane.f32.xlu0 %v417
    %v419 = vpop.xlane.xlu0 %418
    %v420 = vrcp.pop %v419
    %v422 = vlaneseq
    %v423 = vshrl.u32 %v422, 7
    %v424 = vsub.s32 0, %v423
    %v425 = vrot.slane %v420, %v424
    %v426 = vlaneseq
    %v427 = vshrl.u32 %v426, 7
    %v428 = vsub.s32 1, %v427
    %v429 = vrot.slane %v420, %v428
    %v430 = vlaneseq
    %v431 = vshrl.u32 %v430, 7
    %v432 = vsub.s32 2, %v431
    %v433 = vrot.slane %v420, %v432
    %v434 = vlaneseq
    %v435 = vshrl.u32 %v434, 7
    %v436 = vsub.s32 3, %v435
    %v437 = vrot.slane %v420, %v436
    %v438 = vlaneseq
    %v439 = vshrl.u32 %v438, 7
    %v440 = vsub.s32 4, %v439
    %v441 = vrot.slane %v420, %v440
    %v442 = vlaneseq
    %v443 = vshrl.u32 %v442, 7
    %v444 = vsub.s32 5, %v443
    %v445 = vrot.slane %v420, %v444
    %v446 = vlaneseq
    %v447 = vshrl.u32 %v446, 7
    %v448 = vsub.s32 6, %v447
    %v449 = vrot.slane %v420, %v448
    %v450 = vlaneseq
    %v451 = vshrl.u32 %v450, 7
    %v452 = vsub.s32 7, %v451
    %v453 = vrot.slane %v420, %v452
    %v462 = vmul.f32 %v330, %v425
    %v463 = vmul.f32 %v332, %v429
    %v464 = vmul.f32 %v334, %v433
    %v465 = vmul.f32 %v336, %v437
    %v466 = vmul.f32 %v338, %v441
    %v467 = vmul.f32 %v340, %v445
    %v468 = vmul.f32 %v342, %v449
    %v469 = vmul.f32 %v344, %v453
    %471 = vset.pattern.permute.xlu0 0
    %472 = vperm.xlu0 %471, %v462
    %v473 = vpop.permute.xlu0 %472
    %476 = vset.pattern.permute.xlu0 0
    %477 = vperm.xlu0 %476, %v463
    %v478 = vpop.permute.xlu0 %477
    %481 = vset.pattern.permute.xlu0 0
    %482 = vperm.xlu0 %481, %v464
    %v483 = vpop.permute.xlu0 %482
    %486 = vset.pattern.permute.xlu0 0
    %487 = vperm.xlu0 %486, %v465
    %v488 = vpop.permute.xlu0 %487
    %491 = vset.pattern.permute.xlu0 0
    %492 = vperm.xlu0 %491, %v466
    %v493 = vpop.permute.xlu0 %492
    %496 = vset.pattern.permute.xlu0 0
    %497 = vperm.xlu0 %496, %v467
    %v498 = vpop.permute.xlu0 %497
    %501 = vset.pattern.permute.xlu0 0
    %502 = vperm.xlu0 %501, %v468
    %v503 = vpop.permute.xlu0 %502
    %506 = vset.pattern.permute.xlu0 0
    %507 = vperm.xlu0 %506, %v469
    %v508 = vpop.permute.xlu0 %507
    %v510 = vmul.f32 %v473, %v65
    %v511 = vmul.f32 %v478, %v66
    %v512 = vmul.f32 %v483, %v67
    %v513 = vmul.f32 %v488, %v68
    %v514 = vmul.f32 %v493, %v69
    %v515 = vmul.f32 %v498, %v70
    %v516 = vmul.f32 %v503, %v71
    %v517 = vmul.f32 %v508, %v72
    %v518 = vsel %vm109, %v510, 0.0
    %v519 = vrot.slane %v518, 4
    %v520 = vadd.f32 %v518, %v519
    %v521 = vrot.slane %v520, 2
    %v522 = vadd.f32 %v520, %v521
    %v523 = vrot.slane %v522, 1
    %v524 = vadd.f32 %v522, %v523
    %v525 = vsel %vm109, %v511, 0.0
    %v526 = vrot.slane %v525, 4
    %v527 = vadd.f32 %v525, %v526
    %v528 = vrot.slane %v527, 2
    %v529 = vadd.f32 %v527, %v528
    %v530 = vrot.slane %v529, 1
    %v531 = vadd.f32 %v529, %v530
    %v532 = vsel %vm109, %v512, 0.0
    %v533 = vrot.slane %v532, 4
    %v534 = vadd.f32 %v532, %v533
    %v535 = vrot.slane %v534, 2
    %v536 = vadd.f32 %v534, %v535
    %v537 = vrot.slane %v536, 1
    %v538 = vadd.f32 %v536, %v537
    %v539 = vsel %vm109, %v513, 0.0
    %v540 = vrot.slane %v539, 4
    %v541 = vadd.f32 %v539, %v540
    %v542 = vrot.slane %v541, 2
    %v543 = vadd.f32 %v541, %v542
    %v544 = vrot.slane %v543, 1
    %v545 = vadd.f32 %v543, %v544
    %v546 = vsel %vm109, %v514, 0.0
    %v547 = vrot.slane %v546, 4
    %v548 = vadd.f32 %v546, %v547
    %v549 = vrot.slane %v548, 2
    %v550 = vadd.f32 %v548, %v549
    %v551 = vrot.slane %v550, 1
    %v552 = vadd.f32 %v550, %v551
    %v553 = vsel %vm109, %v515, 0.0
    %v554 = vrot.slane %v553, 4
    %v555 = vadd.f32 %v553, %v554
    %v556 = vrot.slane %v555, 2
    %v557 = vadd.f32 %v555, %v556
    %v558 = vrot.slane %v557, 1
    %v559 = vadd.f32 %v557, %v558
    %v560 = vsel %vm109, %v516, 0.0
    %v561 = vrot.slane %v560, 4
    %v562 = vadd.f32 %v560, %v561
    %v563 = vrot.slane %v562, 2
    %v564 = vadd.f32 %v562, %v563
    %v565 = vrot.slane %v564, 1
    %v566 = vadd.f32 %v564, %v565
    %v567 = vsel %vm109, %v517, 0.0
    %v568 = vrot.slane %v567, 4
    %v569 = vadd.f32 %v567, %v568
    %v570 = vrot.slane %v569, 2
    %v571 = vadd.f32 %v569, %v570
    %v572 = vrot.slane %v571, 1
    %v573 = vadd.f32 %v571, %v572
    %v574 = vpack.c.bf16 %v524, %v524
    %v575 = vpack.c.bf16 %v531, %v531
    %v576 = vpack.c.bf16 %v538, %v538
    %v577 = vpack.c.bf16 %v545, %v545
    %v578 = vpack.c.bf16 %v552, %v552
    %v579 = vpack.c.bf16 %v559, %v559
    %v580 = vpack.c.bf16 %v566, %v566
    %v581 = vpack.c.bf16 %v573, %v573
    %v582 = vld [vmem:[#allocation7] sm:$0xf]
    %v583 = vld [vmem:[#allocation7 + $0x4] sm:$0xf]
    %v584 = vld [vmem:[#allocation7 + $0x8] sm:$0xf]
    %v585 = vld [vmem:[#allocation7 + $0xc] sm:$0xf]
    %v594 = vunpack.c.l.b16 %v574
    %v595 = vunpack.c.l.b16 %v575
    %v596 = vunpack.c.l.b16 %v576
    %v597 = vunpack.c.l.b16 %v577
    %v598 = vunpack.c.l.b16 %v578
    %v599 = vunpack.c.l.b16 %v579
    %v600 = vunpack.c.l.b16 %v580
    %v601 = vunpack.c.l.b16 %v581
    %v602 = vsel %vm261, %v595, %v594
    %v603 = vsel %vm263, %v596, %v602
    %v604 = vsel %vm265, %v597, %v603
    %v605 = vsel %vm267, %v598, %v604
    %v606 = vsel %vm269, %v599, %v605
    %v607 = vsel %vm271, %v600, %v606
    %v608 = vsel %vm273, %v601, %v607
    %v609 = vpack.c.b16 %v608, %v608
    %v614 = vunpack.c.l.b16 %v582
    %v615 = vunpack.c.l.b16 %v583
    %v616 = vunpack.c.l.b16 %v584
    %v617 = vunpack.c.l.b16 %v585
    %v618 = vpack.c.b16 %v615, %v614
    %v619 = vpack.c.b16 %v617, %v616
    %v623 = vsel %vm109, %v609, 0
    %625 = vmatprep.subr.bf16.mxu0 0
    %626 = vmatpush1.bf16.msra.mxu0 %v618
    %627 = vmatprep.subr.bf16.mxu0 0
    %628 = vmatpush1.bf16.msra.mxu0 %v619
    %629 = vmatprep.subr.bf16.mxu0 0
    %630 = vmatpush1.bf16.msra.mxu0 0
    %631 = vmatprep.subr.bf16.mxu0 0
    %632 = vmatpush1.bf16.msra.mxu0 0
    %633 = vmatprep.subr.bf16.mxu0 0
    %634 = vmatpush1.bf16.msra.mxu0 0
    %635 = vmatprep.subr.bf16.mxu0 0
    %636 = vmatpush1.bf16.msra.mxu0 0
    %637 = vmatprep.subr.bf16.mxu0 0
    %638 = vmatpush1.bf16.msra.mxu0 0
    %639 = vmatprep.subr.bf16.mxu0 0
    %640 = vmatpush1.bf16.msra.mxu0 0
    %641 = vmatprep.subr.bf16.mxu0 0
    %642 = vmatpush1.bf16.msra.mxu0 0
    %643 = vmatprep.subr.bf16.mxu0 0
    %644 = vmatpush1.bf16.msra.mxu0 0
    %645 = vmatprep.subr.bf16.mxu0 0
    %646 = vmatpush1.bf16.msra.mxu0 0
    %647 = vmatprep.subr.bf16.mxu0 0
    %648 = vmatpush1.bf16.msra.mxu0 0
    %649 = vmatprep.subr.bf16.mxu0 0
    %650 = vmatpush1.bf16.msra.mxu0 0
    %651 = vmatprep.subr.bf16.mxu0 0
    %652 = vmatpush1.bf16.msra.mxu0 0
    %653 = vmatprep.subr.bf16.mxu0 0
    %654 = vmatpush1.bf16.msra.mxu0 0
    %655 = vmatprep.subr.bf16.mxu0 0
    %656 = vmatpush1.bf16.msra.mxu0 0
    %657 = vmatprep.mubr.bf16.mxu0 0
    %658 = vmatmul.mubr.bf16.gmra.mrb[0].mxu0 %v623
    %v659 = vpop.f32.mrb[0].mxu0
    %v660 = vadd.f32 0.0, %v659
    %v661 = vpop.f32.mrb[0].mxu0
    %v662 = vpop.f32.mrb[0].mxu0
    %v663 = vpop.f32.mrb[0].mxu0
    %664 = vdwg.mxu0
    %665 = vst.msk [vmem:[#allocation8] sm:$0xff] %vm109, %v660
    // Predicated region
    $region26: #{tpu_custom_call.1} parent=1 // pred_check
      _
    $region27: #{tpu_custom_call.1} parent=1 // pred_check_branch
      %667 = sbr.rel (0) target = $region29
    $region28: #{tpu_custom_call.1} parent=1 // pred_region
      %s669 = ssub.s32 128, 128
      %670 = vsyncadd [#allocation4], %s669
      %s672 = sshll.u32 [#allocation8], 4
      %s673 = int_to_ptr.vmem [resolvable:$true] %s672
      %675 = dma.vmem_to_hbm [thread:$0]  %s673, 128, %s3, [#allocation4]
    $region29: #{tpu_custom_call.1} parent=1 // pred_fallthru
      _
    // Predicated region
    $region30: #{tpu_custom_call.1} parent=1 // pred_check
      _
    $region31: #{tpu_custom_call.1} parent=1 // pred_check_branch
      %677 = sbr.rel (0) target = $region33
    $region32: #{tpu_custom_call.1} parent=1 // pred_region
      %678 = dma.done [#allocation4], 128
    $region33: #{tpu_custom_call.1} parent=1 // pred_fallthru
      _
    %679 = vsyncpa [#allocation3], 1
    %680 = vsyncpa [#allocation6], 1
    %681 = vsyncpa [#allocation4], 1

// kernel: tpu_custom_call.1
$region0: #{tpu_custom_call.1}
  #allocation0 [shape = 'u32[]', space=smem, size = 0x4, offset = 0x4, fixed_abs, tag = 'smem constant byte address 0x4 - core index']
  #allocation1 [shape = 'u32[144,128]{1,0:T(1,128)}', space=vmem, size = 0x12000, scoped, tag = 'internal scratch']
  %s0 = inlined_call_operand.hbm [shape: bf16[8,8,32], index: 0, kind: input, shape index: {}]
  %s1 = inlined_call_operand.hbm [shape: bf16[32,32], index: 1, kind: input, shape index: {}]
  %s2 = inlined_call_operand.hbm [shape: bf16[32,32], index: 2, kind: input, shape index: {}]
  %s3 = inlined_call_operand.hbm [shape: f32[8,32], index: 3, kind: output, shape index: {}]
  %s4 = sld [smem:[#allocation0]]
  $region34: #{tpu_custom_call.1} parent=0
    _
  %s6 = ssub.s32 1, %s4
  %s7 = scalar_select 0, %s6, %s4
  $region1: #{tpu_custom_call.1} parent=0
    #allocation2 [shape = 'u8[16384]{0}', space=vmem, size = 0x4000, scoped, tag = 'input window, operand 0, single buffered']
    #allocation3 [shape = 's32[1]{0}', space=sflag, size = 0x4, scoped, tag = 'scoped memory for tpu_custom_call.1']
    #allocation4 [shape = 's32[1]{0}', space=sflag, size = 0x4, scoped, tag = 'scoped memory for tpu_custom_call.1']
    #allocation5 [shape = 'u8[8192]{0}', space=vmem, size = 0x2000, scoped, tag = 'input window, operand 1, single buffered']
    #allocation6 [shape = 's32[1]{0}', space=sflag, size = 0x4, scoped, tag = 'scoped memory for tpu_custom_call.1']
    #allocation7 [shape = 'u8[8192]{0}', space=vmem, size = 0x2000, scoped, tag = 'input window, operand 2, single buffered']
    #allocation8 [shape = 'u8[4096]{0}', space=vmem, size = 0x1000, scoped, tag = 'output window, operand 0, single buffered']
    %8 = vsyncpa [#allocation3], 0
    %9 = vsyncpa [#allocation6], 0
    %10 = vsyncpa [#allocation4], 0
    // Predicated region
    $region2: #{tpu_custom_call.1} parent=1 // pred_check
      _
    $region3: #{tpu_custom_call.1} parent=1 // pred_check_branch
      %12 = sbr.rel (0) target = $region5
    $region4: #{tpu_custom_call.1} parent=1 // pred_region
      %s14 = ssub.s32 512, 512
      %15 = vsyncadd [#allocation3], %s14
      %s16 = sshll.u32 [#allocation2], 4
      %s17 = int_to_ptr.vmem [resolvable:$true] %s16
      %22 = dma.hbm_to_vmem [thread:$0]  %s0, 512, %s17, [#allocation3], 64, 64, 4
    $region5: #{tpu_custom_call.1} parent=1 // pred_fallthru
      _
    // Predicated region
    $region6: #{tpu_custom_call.1} parent=1 // pred_check
      _
    $region7: #{tpu_custom_call.1} parent=1 // pred_check_branch
      %24 = sbr.rel (0) target = $region9
    $region8: #{tpu_custom_call.1} parent=1 // pred_region
      %s26 = ssub.s32 256, 256
      %27 = vsyncadd [#allocation6], %s26
      %s28 = sshll.u32 [#allocation5], 4
      %s29 = int_to_ptr.vmem [resolvable:$true] %s28
      %34 = dma.hbm_to_vmem [thread:$0]  %s1, 256, %s29, [#allocation6], 64, 64, 4
    $region9: #{tpu_custom_call.1} parent=1 // pred_fallthru
      _
    // Predicated region
    $region10: #{tpu_custom_call.1} parent=1 // pred_check
      _
    $region11: #{tpu_custom_call.1} parent=1 // pred_check_branch
      %36 = sbr.rel (0) target = $region13
    $region12: #{tpu_custom_call.1} parent=1 // pred_region
      %s38 = ssub.s32 256, 256
      %39 = vsyncadd [#allocation6], %s38
      %s40 = sshll.u32 [#allocation7], 4
      %s41 = int_to_ptr.vmem [resolvable:$true] %s40
      %46 = dma.hbm_to_vmem [thread:$0]  %s2, 256, %s41, [#allocation6], 64, 64, 4
    $region13: #{tpu_custom_call.1} parent=1 // pred_fallthru
      _
    // Predicated region
    $region14: #{tpu_custom_call.1} parent=1 // pred_check
      _
    $region15: #{tpu_custom_call.1} parent=1 // pred_check_branch
      %48 = sbr.rel (0) target = $region17
    $region16: #{tpu_custom_call.1} parent=1 // pred_region
      %49 = dma.done [#allocation3], 512
    $region17: #{tpu_custom_call.1} parent=1 // pred_fallthru
      _
    // Predicated region
    $region18: #{tpu_custom_call.1} parent=1 // pred_check
      _
    $region19: #{tpu_custom_call.1} parent=1 // pred_check_branch
      %51 = sbr.rel (0) target = $region21
    $region20: #{tpu_custom_call.1} parent=1 // pred_region
      %52 = dma.done [#allocation6], 256
    $region21: #{tpu_custom_call.1} parent=1 // pred_fallthru
      _
    // Predicated region
    $region22: #{tpu_custom_call.1} parent=1 // pred_check
      _
    $region23: #{tpu_custom_call.1} parent=1 // pred_check_branch
      %54 = sbr.rel (0) target = $region25
    $region24: #{tpu_custom_call.1} parent=1 // pred_region
      %55 = dma.done [#allocation6], 256
    $region25: #{tpu_custom_call.1} parent=1 // pred_fallthru
      _
    %v57 = vld [vmem:[#allocation2] sm:$0xf]
    %v58 = vld [vmem:[#allocation2 + $0x4] sm:$0xf]
    %v59 = vld [vmem:[#allocation2 + $0x8] sm:$0xf]
    %v60 = vld [vmem:[#allocation2 + $0xc] sm:$0xf]
    %v61 = vld [vmem:[#allocation2 + $0x10] sm:$0xf]
    %v62 = vld [vmem:[#allocation2 + $0x14] sm:$0xf]
    %v63 = vld [vmem:[#allocation2 + $0x18] sm:$0xf]
    %v64 = vld [vmem:[#allocation2 + $0x1c] sm:$0xf]
    %v65 = vunpack.c.l.bf16 %v57
    %v66 = vunpack.c.l.bf16 %v58
    %v67 = vunpack.c.l.bf16 %v59
    %v68 = vunpack.c.l.bf16 %v60
    %v69 = vunpack.c.l.bf16 %v61
    %v70 = vunpack.c.l.bf16 %v62
    %v71 = vunpack.c.l.bf16 %v63
    %v72 = vunpack.c.l.bf16 %v64
    %v73 = vld [vmem:[#allocation5] sm:$0xf]
    %v74 = vld [vmem:[#allocation5 + $0x4] sm:$0xf]
    %v75 = vld [vmem:[#allocation5 + $0x8] sm:$0xf]
    %v76 = vld [vmem:[#allocation5 + $0xc] sm:$0xf]
    %v85 = vunpack.c.l.b16 %v57
    %v86 = vunpack.c.l.b16 %v58
    %v87 = vunpack.c.l.b16 %v59
    %v88 = vunpack.c.l.b16 %v60
    %v89 = vunpack.c.l.b16 %v61
    %v90 = vunpack.c.l.b16 %v62
    %v91 = vunpack.c.l.b16 %v63
    %v92 = vunpack.c.l.b16 %v64
    %v93 = vpack.c.b16 %v86, %v85
    %v94 = vpack.c.b16 %v88, %v87
    %v95 = vpack.c.b16 %v90, %v89
    %v96 = vpack.c.b16 %v92, %v91
    %v101 = vunpack.c.l.b16 %v73
    %v102 = vunpack.c.l.b16 %v74
    %v103 = vunpack.c.l.b16 %v75
    %v104 = vunpack.c.l.b16 %v76
    %v105 = vpack.c.b16 %v102, %v101
    %v106 = vpack.c.b16 %v104, %v103
    %vm109 = vcmask 261120
    %v111 = vsel %vm109, %v93, 0
    %v114 = vsel %vm109, %v94, 0
    %v117 = vsel %vm109, %v95, 0
    %v120 = vsel %vm109, %v96, 0
    %122 = vmatprep.subr.bf16.mxu0 0
    %123 = vmatpush1.bf16.msra.mxu0 %v105
    %124 = vmatprep.subr.bf16.mxu0 0
    %125 = vmatpush1.bf16.msra.mxu0 %v106
    %126 = vmatprep.subr.bf16.mxu0 0
    %127 = vmatpush1.bf16.msra.mxu0 0
    %128 = vmatprep.subr.bf16.mxu0 0
    %129 = vmatpush1.bf16.msra.mxu0 0
    %130 = vmatprep.subr.bf16.mxu0 0
    %131 = vmatpush1.bf16.msra.mxu0 0
    %132 = vmatprep.subr.bf16.mxu0 0
    %133 = vmatpush1.bf16.msra.mxu0 0
    %134 = vmatprep.subr.bf16.mxu0 0
    %135 = vmatpush1.bf16.msra.mxu0 0
    %136 = vmatprep.subr.bf16.mxu0 0
    %137 = vmatpush1.bf16.msra.mxu0 0
    %138 = vmatprep.subr.bf16.mxu0 0
    %139 = vmatpush1.bf16.msra.mxu0 0
    %140 = vmatprep.subr.bf16.mxu0 0
    %141 = vmatpush1.bf16.msra.mxu0 0
    %142 = vmatprep.subr.bf16.mxu0 0
    %143 = vmatpush1.bf16.msra.mxu0 0
    %144 = vmatprep.subr.bf16.mxu0 0
    %145 = vmatpush1.bf16.msra.mxu0 0
    %146 = vmatprep.subr.bf16.mxu0 0
    %147 = vmatpush1.bf16.msra.mxu0 0
    %148 = vmatprep.subr.bf16.mxu0 0
    %149 = vmatpush1.bf16.msra.mxu0 0
    %150 = vmatprep.subr.bf16.mxu0 0
    %151 = vmatpush1.bf16.msra.mxu0 0
    %152 = vmatprep.subr.bf16.mxu0 0
    %153 = vmatpush1.bf16.msra.mxu0 0
    %154 = vmatprep.mubr.bf16.mxu0 0
    %155 = vmatmul.mubr.bf16.gmra.mrb[0].mxu0 %v111
    %v156 = vpop.f32.mrb[0].mxu0
    %v157 = vadd.f32 0.0, %v156
    %v158 = vpop.f32.mrb[0].mxu0
    %v159 = vpop.f32.mrb[0].mxu0
    %v160 = vadd.f32 0.0, %v159
    %v161 = vpop.f32.mrb[0].mxu0
    %162 = vmatprep.mubr.bf16.mxu0 0
    %163 = vmatmul.mubr.bf16.gmra.mrb[0].mxu0 %v114
    %v164 = vpop.f32.mrb[0].mxu0
    %v165 = vadd.f32 0.0, %v164
    %v166 = vpop.f32.mrb[0].mxu0
    %v167 = vpop.f32.mrb[0].mxu0
    %v168 = vadd.f32 0.0, %v167
    %v169 = vpop.f32.mrb[0].mxu0
    %170 = vmatprep.mubr.bf16.mxu0 0
    %171 = vmatmul.mubr.bf16.gmra.mrb[0].mxu0 %v117
    %v172 = vpop.f32.mrb[0].mxu0
    %v173 = vadd.f32 0.0, %v172
    %v174 = vpop.f32.mrb[0].mxu0
    %v175 = vpop.f32.mrb[0].mxu0
    %v176 = vadd.f32 0.0, %v175
    %v177 = vpop.f32.mrb[0].mxu0
    %178 = vmatprep.mubr.bf16.mxu0 0
    %179 = vmatmul.mubr.bf16.gmra.mrb[0].mxu0 %v120
    %v180 = vpop.f32.mrb[0].mxu0
    %v181 = vadd.f32 0.0, %v180
    %v182 = vpop.f32.mrb[0].mxu0
    %v183 = vpop.f32.mrb[0].mxu0
    %v184 = vadd.f32 0.0, %v183
    %v185 = vpop.f32.mrb[0].mxu0
    %186 = vdwg.mxu0
    %v187 = vmul.f32 %v157, %v65
    %v188 = vmul.f32 %v160, %v66
    %v189 = vmul.f32 %v165, %v67
    %v190 = vmul.f32 %v168, %v68
    %v191 = vmul.f32 %v173, %v69
    %v192 = vmul.f32 %v176, %v70
    %v193 = vmul.f32 %v181, %v71
    %v194 = vmul.f32 %v184, %v72
    %v195 = vsel %vm109, %v187, 0.0
    %196 = vadd.xlane.f32.xlu0 %v195
    %v197 = vpop.xlane.xlu0 %196
    %v198 = vsel %vm109, %v188, 0.0
    %199 = vadd.xlane.f32.xlu0 %v198
    %v200 = vpop.xlane.xlu0 %199
    %v201 = vsel %vm109, %v189, 0.0
    %202 = vadd.xlane.f32.xlu0 %v201
    %v203 = vpop.xlane.xlu0 %202
    %v204 = vsel %vm109, %v190, 0.0
    %205 = vadd.xlane.f32.xlu0 %v204
    %v206 = vpop.xlane.xlu0 %205
    %v207 = vsel %vm109, %v191, 0.0
    %208 = vadd.xlane.f32.xlu0 %v207
    %v209 = vpop.xlane.xlu0 %208
    %v210 = vsel %vm109, %v192, 0.0
    %211 = vadd.xlane.f32.xlu0 %v210
    %v212 = vpop.xlane.xlu0 %211
    %v213 = vsel %vm109, %v193, 0.0
    %214 = vadd.xlane.f32.xlu0 %v213
    %v215 = vpop.xlane.xlu0 %214
    %v216 = vsel %vm109, %v194, 0.0
    %217 = vadd.xlane.f32.xlu0 %v216
    %v218 = vpop.xlane.xlu0 %217
    %v227 = vlaneseq
    %v228 = vand.u32 %v227, 127
    %v229 = vlaneseq
    %v230 = vshrl.u32 %v229, 7
    %v231 = vsub.s32 %v228, %v230
    %v232 = vrot.slane %v197, %v231
    %v233 = vlaneseq
    %v234 = vshrl.u32 %v233, 7
    %v235 = vsub.s32 %v228, %v234
    %v236 = vrot.slane %v200, %v235
    %v237 = vlaneseq
    %v238 = vshrl.u32 %v237, 7
    %v239 = vsub.s32 %v228, %v238
    %v240 = vrot.slane %v203, %v239
    %v241 = vlaneseq
    %v242 = vshrl.u32 %v241, 7
    %v243 = vsub.s32 %v228, %v242
    %v244 = vrot.slane %v206, %v243
    %v245 = vlaneseq
    %v246 = vshrl.u32 %v245, 7
    %v247 = vsub.s32 %v228, %v246
    %v248 = vrot.slane %v209, %v247
    %v249 = vlaneseq
    %v250 = vshrl.u32 %v249, 7
    %v251 = vsub.s32 %v228, %v250
    %v252 = vrot.slane %v212, %v251
    %v253 = vlaneseq
    %v254 = vshrl.u32 %v253, 7
    %v255 = vsub.s32 %v228, %v254
    %v256 = vrot.slane %v215, %v255
    %v257 = vlaneseq
    %v258 = vshrl.u32 %v257, 7
    %v259 = vsub.s32 %v228, %v258
    %v260 = vrot.slane %v218, %v259
    %vm261 = vcmask 1041409
    %v262 = vsel %vm261, %v236, %v232
    %vm263 = vcmask 1042434
    %v264 = vsel %vm263, %v240, %v262
    %vm265 = vcmask 1043459
    %v266 = vsel %vm265, %v244, %v264
    %vm267 = vcmask 1044484
    %v268 = vsel %vm267, %v248, %v266
    %vm269 = vcmask 1045509
    %v270 = vsel %vm269, %v252, %v268
    %vm271 = vcmask 1046534
    %v272 = vsel %vm271, %v256, %v270
    %vm273 = vcmask 1047559
    %v274 = vsel %vm273, %v260, %v272
    %vm276 = vcmask 64512
    %v277 = vsel %vm276, %v274, -inf
    %278 = vmax.xlane.f32.xlu0 %v277
    %v279 = vpop.xlane.xlu0 %278
    %v281 = vlaneseq
    %v282 = vshrl.u32 %v281, 7
    %v283 = vsub.s32 0, %v282
    %v284 = vrot.slane %v279, %v283
    %v285 = vlaneseq
    %v286 = vshrl.u32 %v285, 7
    %v287 = vsub.s32 1, %v286
    %v288 = vrot.slane %v279, %v287
    %v289 = vlaneseq
    %v290 = vshrl.u32 %v289, 7
    %v291 = vsub.s32 2, %v290
    %v292 = vrot.slane %v279, %v291
    %v293 = vlaneseq
    %v294 = vshrl.u32 %v293, 7
    %v295 = vsub.s32 3, %v294
    %v296 = vrot.slane %v279, %v295
    %v297 = vlaneseq
    %v298 = vshrl.u32 %v297, 7
    %v299 = vsub.s32 4, %v298
    %v300 = vrot.slane %v279, %v299
    %v301 = vlaneseq
    %v302 = vshrl.u32 %v301, 7
    %v303 = vsub.s32 5, %v302
    %v304 = vrot.slane %v279, %v303
    %v305 = vlaneseq
    %v306 = vshrl.u32 %v305, 7
    %v307 = vsub.s32 6, %v306
    %v308 = vrot.slane %v279, %v307
    %v309 = vlaneseq
    %v310 = vshrl.u32 %v309, 7
    %v311 = vsub.s32 7, %v310
    %v312 = vrot.slane %v279, %v311
    %v321 = vsub.f32 %v197, %v284
    %v322 = vsub.f32 %v200, %v288
    %v323 = vsub.f32 %v203, %v292
    %v324 = vsub.f32 %v206, %v296
    %v325 = vsub.f32 %v209, %v300
    %v326 = vsub.f32 %v212, %v304
    %v327 = vsub.f32 %v215, %v308
    %v328 = vsub.f32 %v218, %v312
    %v329 = vmul.f32 %v321, 1.442695
    %v330 = vpow.pop %v329
    %v331 = vmul.f32 %v322, 1.442695
    %v332 = vpow.pop %v331
    %v333 = vmul.f32 %v323, 1.442695
    %v334 = vpow.pop %v333
    %v335 = vmul.f32 %v324, 1.442695
    %v336 = vpow.pop %v335
    %v337 = vmul.f32 %v325, 1.442695
    %v338 = vpow.pop %v337
    %v339 = vmul.f32 %v326, 1.442695
    %v340 = vpow.pop %v339
    %v341 = vmul.f32 %v327, 1.442695
    %v342 = vpow.pop %v341
    %v343 = vmul.f32 %v328, 1.442695
    %v344 = vpow.pop %v343
    %353 = vset.pattern.permute.xlu0 0
    %354 = vperm.xlu0 %353, %v330
    %v355 = vpop.permute.xlu0 %354
    %356 = vset.pattern.permute.xlu0 0
    %357 = vperm.xlu0 %356, %v332
    %v358 = vpop.permute.xlu0 %357
    %359 = vset.pattern.permute.xlu0 0
    %360 = vperm.xlu0 %359, %v334
    %v361 = vpop.permute.xlu0 %360
    %362 = vset.pattern.permute.xlu0 0
    %363 = vperm.xlu0 %362, %v336
    %v364 = vpop.permute.xlu0 %363
    %365 = vset.pattern.permute.xlu0 0
    %366 = vperm.xlu0 %365, %v338
    %v367 = vpop.permute.xlu0 %366
    %368 = vset.pattern.permute.xlu0 0
    %369 = vperm.xlu0 %368, %v340
    %v370 = vpop.permute.xlu0 %369
    %371 = vset.pattern.permute.xlu0 0
    %372 = vperm.xlu0 %371, %v342
    %v373 = vpop.permute.xlu0 %372
    %374 = vset.pattern.permute.xlu0 0
    %375 = vperm.xlu0 %374, %v344
    %v376 = vpop.permute.xlu0 %375
    %v377 = vlaneseq
    %v378 = vshrl.u32 %v377, 7
    %v379 = vsub.s32 %v228, %v378
    %v380 = vrot.slane %v355, %v379
    %v381 = vlaneseq
    %v382 = vshrl.u32 %v381, 7
    %v383 = vsub.s32 %v228, %v382
    %v384 = vrot.slane %v358, %v383
    %v385 = vlaneseq
    %v386 = vshrl.u32 %v385, 7
    %v387 = vsub.s32 %v228, %v386
    %v388 = vrot.slane %v361, %v387
    %v389 = vlaneseq
    %v390 = vshrl.u32 %v389, 7
    %v391 = vsub.s32 %v228, %v390
    %v392 = vrot.slane %v364, %v391
    %v393 = vlaneseq
    %v394 = vshrl.u32 %v393, 7
    %v395 = vsub.s32 %v228, %v394
    %v396 = vrot.slane %v367, %v395
    %v397 = vlaneseq
    %v398 = vshrl.u32 %v397, 7
    %v399 = vsub.s32 %v228, %v398
    %v400 = vrot.slane %v370, %v399
    %v401 = vlaneseq
    %v402 = vshrl.u32 %v401, 7
    %v403 = vsub.s32 %v228, %v402
    %v404 = vrot.slane %v373, %v403
    %v405 = vlaneseq
    %v406 = vshrl.u32 %v405, 7
    %v407 = vsub.s32 %v228, %v406
    %v408 = vrot.slane %v376, %v407
    %v409 = vsel %vm261, %v384, %v380
    %v410 = vsel %vm263, %v388, %v409
    %v411 = vsel %vm265, %v392, %v410
    %v412 = vsel %vm267, %v396, %v411
    %v413 = vsel %vm269, %v400, %v412
    %v414 = vsel %vm271, %v404, %v413
    %v415 = vsel %vm273, %v408, %v414
    %v417 = vsel %vm276, %v415, 0.0
    %418 = vadd.xlane.f32.xlu0 %v417
    %v419 = vpop.xlane.xlu0 %418
    %v420 = vrcp.pop %v419
    %v422 = vlaneseq
    %v423 = vshrl.u32 %v422, 7
    %v424 = vsub.s32 0, %v423
    %v425 = vrot.slane %v420, %v424
    %v426 = vlaneseq
    %v427 = vshrl.u32 %v426, 7
    %v428 = vsub.s32 1, %v427
    %v429 = vrot.slane %v420, %v428
    %v430 = vlaneseq
    %v431 = vshrl.u32 %v430, 7
    %v432 = vsub.s32 2, %v431
    %v433 = vrot.slane %v420, %v432
    %v434 = vlaneseq
    %v435 = vshrl.u32 %v434, 7
    %v436 = vsub.s32 3, %v435
    %v437 = vrot.slane %v420, %v436
    %v438 = vlaneseq
    %v439 = vshrl.u32 %v438, 7
    %v440 = vsub.s32 4, %v439
    %v441 = vrot.slane %v420, %v440
    %v442 = vlaneseq
    %v443 = vshrl.u32 %v442, 7
    %v444 = vsub.s32 5, %v443
    %v445 = vrot.slane %v420, %v444
    %v446 = vlaneseq
    %v447 = vshrl.u32 %v446, 7
    %v448 = vsub.s32 6, %v447
    %v449 = vrot.slane %v420, %v448
    %v450 = vlaneseq
    %v451 = vshrl.u32 %v450, 7
    %v452 = vsub.s32 7, %v451
    %v453 = vrot.slane %v420, %v452
    %v462 = vmul.f32 %v330, %v425
    %v463 = vmul.f32 %v332, %v429
    %v464 = vmul.f32 %v334, %v433
    %v465 = vmul.f32 %v336, %v437
    %v466 = vmul.f32 %v338, %v441
    %v467 = vmul.f32 %v340, %v445
    %v468 = vmul.f32 %v342, %v449
    %v469 = vmul.f32 %v344, %v453
    %471 = vset.pattern.permute.xlu0 0
    %472 = vperm.xlu0 %471, %v462
    %v473 = vpop.permute.xlu0 %472
    %476 = vset.pattern.permute.xlu0 0
    %477 = vperm.xlu0 %476, %v463
    %v478 = vpop.permute.xlu0 %477
    %481 = vset.pattern.permute.xlu0 0
    %482 = vperm.xlu0 %481, %v464
    %v483 = vpop.permute.xlu0 %482
    %486 = vset.pattern.permute.xlu0 0
    %487 = vperm.xlu0 %486, %v465
    %v488 = vpop.permute.xlu0 %487
    %491 = vset.pattern.permute.xlu0 0
    %492 = vperm.xlu0 %491, %v466
    %v493 = vpop.permute.xlu0 %492
    %496 = vset.pattern.permute.xlu0 0
    %497 = vperm.xlu0 %496, %v467
    %v498 = vpop.permute.xlu0 %497
    %501 = vset.pattern.permute.xlu0 0
    %502 = vperm.xlu0 %501, %v468
    %v503 = vpop.permute.xlu0 %502
    %506 = vset.pattern.permute.xlu0 0
    %507 = vperm.xlu0 %506, %v469
    %v508 = vpop.permute.xlu0 %507
    %v510 = vmul.f32 %v473, %v65
    %v511 = vmul.f32 %v478, %v66
    %v512 = vmul.f32 %v483, %v67
    %v513 = vmul.f32 %v488, %v68
    %v514 = vmul.f32 %v493, %v69
    %v515 = vmul.f32 %v498, %v70
    %v516 = vmul.f32 %v503, %v71
    %v517 = vmul.f32 %v508, %v72
    %v518 = vsel %vm109, %v510, 0.0
    %v519 = vrot.slane %v518, 4
    %v520 = vadd.f32 %v518, %v519
    %v521 = vrot.slane %v520, 2
    %v522 = vadd.f32 %v520, %v521
    %v523 = vrot.slane %v522, 1
    %v524 = vadd.f32 %v522, %v523
    %v525 = vsel %vm109, %v511, 0.0
    %v526 = vrot.slane %v525, 4
    %v527 = vadd.f32 %v525, %v526
    %v528 = vrot.slane %v527, 2
    %v529 = vadd.f32 %v527, %v528
    %v530 = vrot.slane %v529, 1
    %v531 = vadd.f32 %v529, %v530
    %v532 = vsel %vm109, %v512, 0.0
    %v533 = vrot.slane %v532, 4
    %v534 = vadd.f32 %v532, %v533
    %v535 = vrot.slane %v534, 2
    %v536 = vadd.f32 %v534, %v535
    %v537 = vrot.slane %v536, 1
    %v538 = vadd.f32 %v536, %v537
    %v539 = vsel %vm109, %v513, 0.0
    %v540 = vrot.slane %v539, 4
    %v541 = vadd.f32 %v539, %v540
    %v542 = vrot.slane %v541, 2
    %v543 = vadd.f32 %v541, %v542
    %v544 = vrot.slane %v543, 1
    %v545 = vadd.f32 %v543, %v544
    %v546 = vsel %vm109, %v514, 0.0
    %v547 = vrot.slane %v546, 4
    %v548 = vadd.f32 %v546, %v547
    %v549 = vrot.slane %v548, 2
    %v550 = vadd.f32 %v548, %v549
    %v551 = vrot.slane %v550, 1
    %v552 = vadd.f32 %v550, %v551
    %v553 = vsel %vm109, %v515, 0.0
    %v554 = vrot.slane %v553, 4
    %v555 = vadd.f32 %v553, %v554
    %v556 = vrot.slane %v555, 2
    %v557 = vadd.f32 %v555, %v556
    %v558 = vrot.slane %v557, 1
    %v559 = vadd.f32 %v557, %v558
    %v560 = vsel %vm109, %v516, 0.0
    %v561 = vrot.slane %v560, 4
    %v562 = vadd.f32 %v560, %v561
    %v563 = vrot.slane %v562, 2
    %v564 = vadd.f32 %v562, %v563
    %v565 = vrot.slane %v564, 1
    %v566 = vadd.f32 %v564, %v565
    %v567 = vsel %vm109, %v517, 0.0
    %v568 = vrot.slane %v567, 4
    %v569 = vadd.f32 %v567, %v568
    %v570 = vrot.slane %v569, 2
    %v571 = vadd.f32 %v569, %v570
    %v572 = vrot.slane %v571, 1
    %v573 = vadd.f32 %v571, %v572
    %v574 = vpack.c.bf16 %v524, %v524
    %v575 = vpack.c.bf16 %v531, %v531
    %v576 = vpack.c.bf16 %v538, %v538
    %v577 = vpack.c.bf16 %v545, %v545
    %v578 = vpack.c.bf16 %v552, %v552
    %v579 = vpack.c.bf16 %v559, %v559
    %v580 = vpack.c.bf16 %v566, %v566
    %v581 = vpack.c.bf16 %v573, %v573
    %v582 = vld [vmem:[#allocation7] sm:$0xf]
    %v583 = vld [vmem:[#allocation7 + $0x4] sm:$0xf]
    %v584 = vld [vmem:[#allocation7 + $0x8] sm:$0xf]
    %v585 = vld [vmem:[#allocation7 + $0xc] sm:$0xf]
    %v594 = vunpack.c.l.b16 %v574
    %v595 = vunpack.c.l.b16 %v575
    %v596 = vunpack.c.l.b16 %v576
    %v597 = vunpack.c.l.b16 %v577
    %v598 = vunpack.c.l.b16 %v578
    %v599 = vunpack.c.l.b16 %v579
    %v600 = vunpack.c.l.b16 %v580
    %v601 = vunpack.c.l.b16 %v581
    %v602 = vsel %vm261, %v595, %v594
    %v603 = vsel %vm263, %v596, %v602
    %v604 = vsel %vm265, %v597, %v603
    %v605 = vsel %vm267, %v598, %v604
    %v606 = vsel %vm269, %v599, %v605
    %v607 = vsel %vm271, %v600, %v606
    %v608 = vsel %vm273, %v601, %v607
    %v609 = vpack.c.b16 %v608, %v608
    %v614 = vunpack.c.l.b16 %v582
    %v615 = vunpack.c.l.b16 %v583
    %v616 = vunpack.c.l.b16 %v584
    %v617 = vunpack.c.l.b16 %v585
    %v618 = vpack.c.b16 %v615, %v614
    %v619 = vpack.c.b16 %v617, %v616
    %v623 = vsel %vm109, %v609, 0
    %625 = vmatprep.subr.bf16.mxu0 0
    %626 = vmatpush1.bf16.msra.mxu0 %v618
    %627 = vmatprep.subr.bf16.mxu0 0
    %628 = vmatpush1.bf16.msra.mxu0 %v619
    %629 = vmatprep.subr.bf16.mxu0 0
    %630 = vmatpush1.bf16.msra.mxu0 0
    %631 = vmatprep.subr.bf16.mxu0 0
    %632 = vmatpush1.bf16.msra.mxu0 0
    %633 = vmatprep.subr.bf16.mxu0 0
    %634 = vmatpush1.bf16.msra.mxu0 0
    %635 = vmatprep.subr.bf16.mxu0 0
    %636 = vmatpush1.bf16.msra.mxu0 0
    %637 = vmatprep.subr.bf16.mxu0 0
    %638 = vmatpush1.bf16.msra.mxu0 0
    %639 = vmatprep.subr.bf16.mxu0 0
    %640 = vmatpush1.bf16.msra.mxu0 0
    %641 = vmatprep.subr.bf16.mxu0 0
    %642 = vmatpush1.bf16.msra.mxu0 0
    %643 = vmatprep.subr.bf16.mxu0 0
    %644 = vmatpush1.bf16.msra.mxu0 0
    %645 = vmatprep.subr.bf16.mxu0 0
    %646 = vmatpush1.bf16.msra.mxu0 0
    %647 = vmatprep.subr.bf16.mxu0 0
    %648 = vmatpush1.bf16.msra.mxu0 0
    %649 = vmatprep.subr.bf16.mxu0 0
    %650 = vmatpush1.bf16.msra.mxu0 0
    %651 = vmatprep.subr.bf16.mxu0 0
    %652 = vmatpush1.bf16.msra.mxu0 0
    %653 = vmatprep.subr.bf16.mxu0 0
    %654 = vmatpush1.bf16.msra.mxu0 0
    %655 = vmatprep.subr.bf16.mxu0 0
    %656 = vmatpush1.bf16.msra.mxu0 0
    %657 = vmatprep.mubr.bf16.mxu0 0
    %658 = vmatmul.mubr.bf16.gmra.mrb[0].mxu0 %v623
    %v659 = vpop.f32.mrb[0].mxu0
    %v660 = vadd.f32 0.0, %v659
    %v661 = vpop.f32.mrb[0].mxu0
    %v662 = vpop.f32.mrb[0].mxu0
    %v663 = vpop.f32.mrb[0].mxu0
    %664 = vdwg.mxu0
    %665 = vst.msk [vmem:[#allocation8] sm:$0xff] %vm109, %v660
    // Predicated region
    $region26: #{tpu_custom_call.1} parent=1 // pred_check
      _
    $region27: #{tpu_custom_call.1} parent=1 // pred_check_branch
      %667 = sbr.rel (0) target = $region29
    $region28: #{tpu_custom_call.1} parent=1 // pred_region
      %s669 = ssub.s32 128, 128
      %670 = vsyncadd [#allocation4], %s669
      %s672 = sshll.u32 [#allocation8], 4
      %s673 = int_to_ptr.vmem [resolvable:$true] %s672
      %675 = dma.vmem_to_hbm [thread:$0]  %s673, 128, %s3, [#allocation4]
    $region29: #{tpu_custom_call.1} parent=1 // pred_fallthru
      _
    // Predicated region
    $region30: #{tpu_custom_call.1} parent=1 // pred_check
      _
    $region31: #{tpu_custom_call.1} parent=1 // pred_check_branch
      %677 = sbr.rel (0) target = $region33
    $region32: #{tpu_custom_call.1} parent=1 // pred_region
      %678 = dma.done [#allocation4], 128
    $region33: #{tpu_custom_call.1} parent=1 // pred_fallthru
      _
    %679 = vsyncpa [#allocation3], 1
    %680 = vsyncpa [#allocation6], 1
    %681 = vsyncpa [#allocation4], 1

</llo_original>
